<compile_context>
chip_gen: v6e
topology: v6e:2x2x1
jax: 0.10.0
libtpu: 0.0.40
codegen_flags: <defaults>
</compile_context>

<pallas_src>
import functools
import math

import jax
import jax.numpy as jnp
from jax.experimental import pallas as pl
from jax.experimental.pallas import tpu as pltpu


# ---------------------------------------------------------------------------
# helpers
# ---------------------------------------------------------------------------
def _round_up(a: int, b: int) -> int:
    return (a + b - 1) // b * b


def _token_tile(n_tok: int, tm: int) -> int:
    # Default is a 256-token tile (full MXU row occupancy); clamp to a
    # sublane-aligned tile for tiny inputs instead of asserting.
    return min(tm, _round_up(n_tok, 8))


def _pad_rows(x2d, m):
    n = x2d.shape[0]
    n_pad = _round_up(n, m)
    if n_pad != n:
        x2d = jnp.pad(x2d, ((0, n_pad - n), (0, 0)))
    return x2d, n


def _itemsize(x):
    return jnp.dtype(x.dtype).itemsize


def _compute_hidden_dim(dim, hidden_dim, multiple_of, ffn_dim_multiplier):
    hidden_dim = int(2 * hidden_dim / 3)
    if ffn_dim_multiplier is not None:
        hidden_dim = int(ffn_dim_multiplier * hidden_dim)
    return multiple_of * ((hidden_dim + multiple_of - 1) // multiple_of)


def _precompute_freqs(head_dim, end, theta=10000.0):
    freqs = 1.0 / (theta ** (jnp.arange(0, head_dim, 2, dtype=jnp.float32)[: head_dim // 2] / head_dim))
    t = jnp.arange(end, dtype=jnp.float32)
    ang = jnp.outer(t, freqs)
    return jnp.cos(ang), jnp.sin(ang)


def _apply_rope(xq, xk, cos, sin):
    """Same math as torch view_as_complex / view_as_real rotary embedding."""
    c = cos[None, :, None, :]
    s = sin[None, :, None, :]

    def rot(x):
        xr = x[..., 0::2]
        xi = x[..., 1::2]
        yr = xr * c - xi * s
        yi = xr * s + xi * c
        return jnp.stack([yr, yi], axis=-1).reshape(x.shape).astype(x.dtype)

    return rot(xq), rot(xk)


# ---------------------------------------------------------------------------
# K1: fused RMSNorm + (fused QKV) projection
# ---------------------------------------------------------------------------
def _norm_matmul_kernel(x_ref, g_ref, w_ref, o_ref, *, eps):
    x = x_ref[...].astype(jnp.float32)
    var = jnp.mean(x * x, axis=-1, keepdims=True)
    xn = (x * jax.lax.rsqrt(var + eps)) * g_ref[...]
    o_ref[...] = jnp.dot(xn.astype(w_ref.dtype), w_ref[...],
                         preferred_element_type=jnp.float32).astype(o_ref.dtype)


def _norm_matmul(x2d, g, w_t, *, eps, tm):
    n_tok, dim = x2d.shape
    out_dim = w_t.shape[1]
    tm_eff = _token_tile(n_tok, tm)
    xp, n = _pad_rows(x2d, tm_eff)
    n_pad = xp.shape[0]
    cost = pl.CostEstimate(
        flops=2 * n_pad * dim * out_dim + 5 * n_pad * dim,
        transcendentals=n_pad,
        bytes_accessed=(xp.size + g.size + w_t.size + n_pad * out_dim) * _itemsize(xp))
    out = pl.pallas_call(
        functools.partial(_norm_matmul_kernel, eps=eps),
        out_shape=jax.ShapeDtypeStruct((n_pad, out_dim), x2d.dtype),
        grid_spec=pltpu.PrefetchScalarGridSpec(
            num_scalar_prefetch=0,
            grid=(n_pad // tm_eff,),
            in_specs=[
                pl.BlockSpec((tm_eff, dim), lambda i: (i, 0)),       # x tile
                pl.BlockSpec((1, dim), lambda i: (0, 0)),            # norm weight
                pl.BlockSpec((dim, out_dim), lambda i: (0, 0)),      # fused weight (resident)
            ],
            out_specs=pl.BlockSpec((tm_eff, out_dim), lambda i: (i, 0)),
        ),
        compiler_params=pltpu.CompilerParams(dimension_semantics=("parallel",)),
        cost_estimate=cost,
    )(xp, g, w_t)
    return out[:n]


# ---------------------------------------------------------------------------
# K2: attention core (per batch*head)
# ---------------------------------------------------------------------------
def _attn_kernel(q_ref, k_ref, v_ref, m_ref, o_ref, *, scale):
    q = q_ref[0].astype(jnp.float32)
    k = k_ref[0].astype(jnp.float32)
    v = v_ref[0]
    s = jax.lax.dot_general(q, k, (((1,), (1,)), ((), ())),
                            preferred_element_type=jnp.float32) * scale
    s = s + m_ref[...]
    s_max = jnp.max(s, axis=-1, keepdims=True)
    p = jnp.exp(s - s_max)
    p = p / jnp.sum(p, axis=-1, keepdims=True)
    o = jnp.dot(p.astype(v.dtype), v, preferred_element_type=jnp.float32)
    o_ref[...] = o[None].astype(o_ref.dtype)


def _attention_core(qh, kh, vh, mask, scale):
    bh, sq, d = qh.shape
    kv = kh.shape[1]
    return pl.pallas_call(
        functools.partial(_attn_kernel, scale=scale),
        out_shape=jax.ShapeDtypeStruct((bh, sq, d), qh.dtype),
        grid_spec=pltpu.PrefetchScalarGridSpec(
            num_scalar_prefetch=0,
            grid=(bh,),
            in_specs=[
                pl.BlockSpec((1, sq, d), lambda i: (i, 0, 0)),
                pl.BlockSpec((1, kv, d), lambda i: (i, 0, 0)),
                pl.BlockSpec((1, kv, d), lambda i: (i, 0, 0)),
                pl.BlockSpec((sq, kv), lambda i: (0, 0)),
            ],
            out_specs=pl.BlockSpec((1, sq, d), lambda i: (i, 0, 0)),
        ),
        compiler_params=pltpu.CompilerParams(dimension_semantics=("parallel",)),
    )(qh, kh, vh, mask)


# ---------------------------------------------------------------------------
# K3: output projection + residual add
# ---------------------------------------------------------------------------
def _matmul_residual_kernel(x_ref, w_ref, r_ref, o_ref):
    acc = jnp.dot(x_ref[...].astype(w_ref.dtype), w_ref[...],
                  preferred_element_type=jnp.float32)
    o_ref[...] = (acc + r_ref[...].astype(jnp.float32)).astype(o_ref.dtype)


def _matmul_residual(x2d, w_t, r2d, *, tm):
    n_tok, in_dim = x2d.shape
    out_dim = w_t.shape[1]
    tm_eff = _token_tile(n_tok, tm)
    xp, n = _pad_rows(x2d, tm_eff)
    rp, _ = _pad_rows(r2d, tm_eff)
    n_pad = xp.shape[0]
    cost = pl.CostEstimate(
        flops=2 * n_pad * in_dim * out_dim + n_pad * out_dim,
        transcendentals=0,
        bytes_accessed=(xp.size + rp.size + w_t.size + n_pad * out_dim) * _itemsize(xp))
    out = pl.pallas_call(
        _matmul_residual_kernel,
        out_shape=jax.ShapeDtypeStruct((n_pad, out_dim), r2d.dtype),
        grid_spec=pltpu.PrefetchScalarGridSpec(
            num_scalar_prefetch=0,
            grid=(n_pad // tm_eff,),
            in_specs=[
                pl.BlockSpec((tm_eff, in_dim), lambda i: (i, 0)),
                pl.BlockSpec((in_dim, out_dim), lambda i: (0, 0)),
                pl.BlockSpec((tm_eff, out_dim), lambda i: (i, 0)),
            ],
            out_specs=pl.BlockSpec((tm_eff, out_dim), lambda i: (i, 0)),
        ),
        compiler_params=pltpu.CompilerParams(dimension_semantics=("parallel",)),
        cost_estimate=cost,
    )(xp, w_t, rp)
    return out[:n]


# ---------------------------------------------------------------------------
# K4: fused RMSNorm + SwiGLU FFN (fused W13) + residual add
# ---------------------------------------------------------------------------
def _ffn_kernel(h_ref, g_ref, w13_ref, w2_ref, o_ref, *, eps, hidden):
    h = h_ref[...].astype(jnp.float32)
    var = jnp.mean(h * h, axis=-1, keepdims=True)
    hn = ((h * jax.lax.rsqrt(var + eps)) * g_ref[...]).astype(w13_ref.dtype)
    h13 = jnp.dot(hn, w13_ref[...], preferred_element_type=jnp.float32)
    h1 = h13[:, :hidden]          # gate projection (w1)
    h3 = h13[:, hidden:]          # up projection (w3)
    gated = (h1 * jax.nn.sigmoid(h1)) * h3          # SiLU in f32
    out = jnp.dot(gated.astype(w2_ref.dtype), w2_ref[...],
                  preferred_element_type=jnp.float32)
    o_ref[...] = (out + h).astype(o_ref.dtype)      # residual add fused


def _ffn_residual(h2d, g, w13_t, w2_t, *, eps, tm):
    n_tok, dim = h2d.shape
    hidden = w2_t.shape[0]
    tm_eff = _token_tile(n_tok, tm)
    hp, n = _pad_rows(h2d, tm_eff)
    n_pad = hp.shape[0]
    cost = pl.CostEstimate(
        flops=2 * n_pad * dim * 2 * hidden + 2 * n_pad * hidden * dim + 10 * n_pad * hidden,
        transcendentals=n_pad * hidden + n_pad,
        bytes_accessed=(2 * hp.size + g.size + w13_t.size + w2_t.size) * _itemsize(hp))
    out = pl.pallas_call(
        functools.partial(_ffn_kernel, eps=eps, hidden=hidden),
        out_shape=jax.ShapeDtypeStruct((n_pad, dim), h2d.dtype),
        grid_spec=pltpu.PrefetchScalarGridSpec(
            num_scalar_prefetch=0,
            grid=(n_pad // tm_eff,),
            in_specs=[
                pl.BlockSpec((tm_eff, dim), lambda i: (i, 0)),
                pl.BlockSpec((1, dim), lambda i: (0, 0)),
                pl.BlockSpec((dim, 2 * hidden), lambda i: (0, 0)),   # W13 (resident)
                pl.BlockSpec((hidden, dim), lambda i: (0, 0)),       # W2  (resident)
            ],
            out_specs=pl.BlockSpec((tm_eff, dim), lambda i: (i, 0)),
        ),
        compiler_params=pltpu.CompilerParams(dimension_semantics=("parallel",)),
        cost_estimate=cost,
    )(hp, g, w13_t, w2_t)
    return out[:n]


# ---------------------------------------------------------------------------
# parameter prep (done once, hoisted out of the per-call path)
# ---------------------------------------------------------------------------
def prepare_params(raw, compute_dtype=jnp.float32):
    """Transpose PyTorch (out, in) weights to right-multiply layout and fuse
    [Wq|Wk|Wv] and [W1|W3] concats. Valid because n_kv_heads == n_heads here."""
    return {
        "attention_norm": raw["attention_norm"].reshape(1, -1).astype(jnp.float32),
        "ffn_norm": raw["ffn_norm"].reshape(1, -1).astype(jnp.float32),
        "wqkv_t": jnp.concatenate([raw["wq"].T, raw["wk"].T, raw["wv"].T],
                                  axis=1).astype(compute_dtype),
        "wo_t": raw["wo"].T.astype(compute_dtype),
        "w13_t": jnp.concatenate([raw["w1"].T, raw["w3"].T], axis=1).astype(compute_dtype),
        "w2_t": raw["w2"].T.astype(compute_dtype),
    }


# ---------------------------------------------------------------------------
# full TransformerBlock forward (kernel path)
# ---------------------------------------------------------------------------
def transformer_block_forward(x, params, cache_k, cache_v, start_pos,
                              freqs_cos, freqs_sin, mask, *,
                              n_heads, eps=1e-5, tm=256):
    bsz, seqlen, dim = x.shape
    head_dim = dim // n_heads
    n_tok = bsz * seqlen
    kv_len = start_pos + seqlen

    x2d = x.reshape(n_tok, dim)

    # --- K1: attention_norm + fused QKV projection ---
    qkv = _norm_matmul(x2d, params["attention_norm"], params["wqkv_t"], eps=eps, tm=tm)
    xq = qkv[:, 0 * dim:1 * dim].reshape(bsz, seqlen, n_heads, head_dim)
    xk = qkv[:, 1 * dim:2 * dim].reshape(bsz, seqlen, n_heads, head_dim)
    xv = qkv[:, 2 * dim:3 * dim].reshape(bsz, seqlen, n_heads, head_dim)

    # --- RoPE + KV-cache update (plain-JAX glue) ---
    xq, xk = _apply_rope(xq, xk, freqs_cos, freqs_sin)
    cache_k = jax.lax.dynamic_update_slice(cache_k, xk.astype(cache_k.dtype), (0, start_pos, 0, 0))
    cache_v = jax.lax.dynamic_update_slice(cache_v, xv.astype(cache_v.dtype), (0, start_pos, 0, 0))
    keys = cache_k[:bsz, :kv_len]
    values = cache_v[:bsz, :kv_len]

    # --- K2: attention core per (batch, head) ---
    qh = xq.transpose(0, 2, 1, 3).reshape(bsz * n_heads, seqlen, head_dim)
    kh = keys.transpose(0, 2, 1, 3).reshape(bsz * n_heads, kv_len, head_dim)
    vh = values.transpose(0, 2, 1, 3).reshape(bsz * n_heads, kv_len, head_dim)
    attn = _attention_core(qh, kh, vh, mask.astype(jnp.float32), 1.0 / math.sqrt(head_dim))
    attn2d = attn.reshape(bsz, n_heads, seqlen, head_dim).transpose(0, 2, 1, 3).reshape(n_tok, dim)

    # --- K3: Wo projection + first residual ---
    h2d = _matmul_residual(attn2d, params["wo_t"], x2d, tm=tm)

    # --- K4: ffn_norm + SwiGLU FFN + second residual ---
    out2d = _ffn_residual(h2d, params["ffn_norm"], params["w13_t"], params["w2_t"],
                          eps=eps, tm=tm)

    return out2d.reshape(bsz, seqlen, dim), cache_k, cache_v


# ---------------------------------------------------------------------------
# pure-JAX reference (mirrors the PyTorch module math exactly)
# ---------------------------------------------------------------------------
def _reference_block(x, p, cache_k, cache_v, start_pos, cos, sin, mask, *, eps, n_heads):
    bsz, seqlen, dim = x.shape
    head_dim = dim // n_heads

    def rmsnorm(v, w):
        vf = v.astype(jnp.float32)
        return (vf * jax.lax.rsqrt(jnp.mean(vf * vf, axis=-1, keepdims=True) + eps)
                ).astype(v.dtype) * w

    xa = rmsnorm(x, p["attention_norm"])
    xq = (xa @ p["wq"].T).reshape(bsz, seqlen, n_heads, head_dim)
    xk = (xa @ p["wk"].T).reshape(bsz, seqlen, n_heads, head_dim)
    xv = (xa @ p["wv"].T).reshape(bsz, seqlen, n_heads, head_dim)
    xq, xk = _apply_rope(xq, xk, cos, sin)

    cache_k = jax.lax.dynamic_update_slice(cache_k, xk, (0, start_pos, 0, 0))
    cache_v = jax.lax.dynamic_update_slice(cache_v, xv, (0, start_pos, 0, 0))
    keys = cache_k[:bsz, :start_pos + seqlen]
    values = cache_v[:bsz, :start_pos + seqlen]

    q = xq.transpose(0, 2, 1, 3)
    k = keys.transpose(0, 2, 1, 3)
    v = values.transpose(0, 2, 1, 3)
    scores = jnp.einsum("bhqd,bhkd->bhqk", q, k) / math.sqrt(head_dim) + mask[None, None]
    probs = jax.nn.softmax(scores.astype(jnp.float32), axis=-1)
    attn = jnp.einsum("bhqk,bhkd->bhqd", probs, v)
    attn = attn.transpose(0, 2, 1, 3).reshape(bsz, seqlen, dim)
    h = x + attn @ p["wo"].T

    hn = rmsnorm(h, p["ffn_norm"])
    h1 = hn @ p["w1"].T
    h3 = hn @ p["w3"].T
    return h + (h1 * jax.nn.sigmoid(h1) * h3) @ p["w2"].T


# ---------------------------------------------------------------------------
# demo / correctness check
# ---------------------------------------------------------------------------
if __name__ == "__main__":
    # Small, lane-aligned shapes consistent with the module structure.
    dim = 128
    n_heads = 4
    head_dim = dim // n_heads           # 32 (even -> RoPE pairs)
    multiple_of = 256
    norm_eps = 1e-5
    max_batch, max_seq = 2, 16
    bsz, seqlen, start_pos = 2, 8, 4
    hidden = _compute_hidden_dim(dim, 4 * dim, multiple_of, None)   # -> 512

    key = jax.random.PRNGKey(0)
    ks = jax.random.split(key, 12)
    init = 0.02

    x = jax.random.normal(ks[0], (bsz, seqlen, dim), jnp.float32)
    raw = {
        "wq": jax.random.normal(ks[1], (dim, dim), jnp.float32) * init,
        "wk": jax.random.normal(ks[2], (dim, dim), jnp.float32) * init,
        "wv": jax.random.normal(ks[3], (dim, dim), jnp.float32) * init,
        "wo": jax.random.normal(ks[4], (dim, dim), jnp.float32) * init,
        "w1": jax.random.normal(ks[5], (hidden, dim), jnp.float32) * init,
        "w2": jax.random.normal(ks[6], (dim, hidden), jnp.float32) * init,
        "w3": jax.random.normal(ks[7], (hidden, dim), jnp.float32) * init,
        "attention_norm": 1.0 + 0.1 * jax.random.normal(ks[8], (dim,), jnp.float32),
        "ffn_norm": 1.0 + 0.1 * jax.random.normal(ks[9], (dim,), jnp.float32),
    }

    # KV cache with a simulated prefix of `start_pos` already-decoded tokens.
    cache_k = jnp.zeros((max_batch, max_seq, n_heads, head_dim), jnp.float32)
    cache_v = jnp.zeros_like(cache_k)
    cache_k = cache_k.at[:, :start_pos].set(
        0.5 * jax.random.normal(ks[10], (max_batch, start_pos, n_heads, head_dim), jnp.float32))
    cache_v = cache_v.at[:, :start_pos].set(
        0.5 * jax.random.normal(ks[11], (max_batch, start_pos, n_heads, head_dim), jnp.float32))

    cos_full, sin_full = _precompute_freqs(head_dim, max_seq)
    cos = cos_full[start_pos:start_pos + seqlen]
    sin = sin_full[start_pos:start_pos + seqlen]

    # LLaMA-style causal mask for seqlen > 1 at start_pos (large-negative instead of -inf).
    causal = jnp.triu(jnp.full((seqlen, seqlen), -1e30, dtype=jnp.float32), k=1)
    mask = jnp.concatenate([jnp.zeros((seqlen, start_pos), jnp.float32), causal], axis=1)

    params = prepare_params(raw)    # one-time weight prep (not in the per-call path)
    out, _, _ = transformer_block_forward(
        x, params, cache_k, cache_v, start_pos, cos, sin, mask,
        n_heads=n_heads, eps=norm_eps)
    out = jax.block_until_ready(out)

    ref = _reference_block(x, raw, cache_k, cache_v, start_pos, cos, sin, mask,
                           eps=norm_eps, n_heads=n_heads)

    assert out.shape == (bsz, seqlen, dim)
    max_err = float(jnp.max(jnp.abs(out - ref)))
    assert jnp.allclose(out, ref, atol=1e-3, rtol=1e-3), f"max abs err {max_err}"
    print("KERNEL_OK")
</pallas_src>

<mosaic_0001>
module attributes {stable_mosaic.version = 11 : i64} {
  func.func @_norm_matmul_kernel(%arg0: i32, %arg1: memref<16x128xf32, #tpu.memory_space<vmem>>, %arg2: memref<1x128xf32, #tpu.memory_space<vmem>>, %arg3: memref<128x384xf32, #tpu.memory_space<vmem>>, %arg4: memref<16x384xf32, #tpu.memory_space<vmem>>) attributes {dimension_semantics = [#tpu.dimension_semantics<parallel>], iteration_bounds = array<i64: 1>, scalar_prefetch = 0 : i64, scratch_operands = 0 : i64, tpu.core_type = #tpu.core_type<tc>, window_params = [{transform_indices = @transform_0, window_bounds = array<i64: 16, 128>}, {pipeline_mode = #tpu.pipeline_mode<synchronous>, transform_indices = @transform_1, window_bounds = array<i64: 1, 128>}, {pipeline_mode = #tpu.pipeline_mode<synchronous>, transform_indices = @transform_2, window_bounds = array<i64: 128, 384>}, {transform_indices = @transform_3, window_bounds = array<i64: 16, 384>}]} {
    %c0 = arith.constant 0 : index
    %c0_0 = arith.constant 0 : index
    %0 = vector.load %arg1[%c0, %c0_0] : memref<16x128xf32, #tpu.memory_space<vmem>>, vector<16x128xf32>
    %1 = arith.mulf %0, %0 : vector<16x128xf32>
    %cst = arith.constant dense<0.000000e+00> : vector<16xf32>
    %2 = vector.multi_reduction <add>, %1, %cst [1] : vector<16x128xf32> to vector<16xf32>
    %3 = vector.shape_cast %2 : vector<16xf32> to vector<16x1xf32>
    %cst_1 = arith.constant 1.280000e+02 : f32
    %4 = vector.broadcast %cst_1 : f32 to vector<16x1xf32>
    %5 = arith.divf %3, %4 : vector<16x1xf32>
    %cst_2 = arith.constant 9.99999974E-6 : f32
    %6 = vector.broadcast %cst_2 : f32 to vector<16x1xf32>
    %7 = arith.addf %5, %6 : vector<16x1xf32>
    %8 = math.rsqrt %7 : vector<16x1xf32>
    %9 = vector.broadcast %8 : vector<16x1xf32> to vector<16x128xf32>
    %10 = arith.mulf %0, %9 : vector<16x128xf32>
    %c0_3 = arith.constant 0 : index
    %c0_4 = arith.constant 0 : index
    %11 = vector.load %arg2[%c0_3, %c0_4] : memref<1x128xf32, #tpu.memory_space<vmem>>, vector<1x128xf32>
    %12 = vector.broadcast %11 : vector<1x128xf32> to vector<16x128xf32>
    %13 = arith.mulf %10, %12 : vector<16x128xf32>
    %c0_5 = arith.constant 0 : index
    %c0_6 = arith.constant 0 : index
    %14 = vector.load %arg3[%c0_5, %c0_6] : memref<128x384xf32, #tpu.memory_space<vmem>>, vector<128x384xf32>
    %cst_7 = arith.constant dense<0.000000e+00> : vector<16x384xf32>
    %15 = tpu.matmul %13, %14, %cst_7 {dimension_numbers = #tpu.dot_dimension_numbers<[1], [0], [0], [1], [0, 0, 1, 1], [], []>} : vector<16x128xf32>, vector<128x384xf32>, vector<16x384xf32> -> vector<16x384xf32>
    %c0_8 = arith.constant 0 : index
    %c0_9 = arith.constant 0 : index
    %16 = vector.load %arg4[%c0_8, %c0_9] : memref<16x384xf32, #tpu.memory_space<vmem>>, vector<16x384xf32>
    tpu.vector_store %arg4[%c0_8, %c0_9], %15 {strides = array<i32>} : memref<16x384xf32, #tpu.memory_space<vmem>>, vector<16x384xf32>,
    return
  }
  func.func @transform_0(%arg0: i32) -> (i32, i32) {
    %c0_i32 = arith.constant 0 : i32
    %c0_i32_0 = arith.constant 0 : i32
    return %arg0, %c0_i32 : i32, i32
  }
  func.func @transform_1(%arg0: i32) -> (i32, i32) {
    %c0_i32 = arith.constant 0 : i32
    %c0_i32_0 = arith.constant 0 : i32
    %c0_i32_1 = arith.constant 0 : i32
    return %c0_i32, %c0_i32_0 : i32, i32
  }
  func.func @transform_2(%arg0: i32) -> (i32, i32) {
    %c0_i32 = arith.constant 0 : i32
    %c0_i32_0 = arith.constant 0 : i32
    %c0_i32_1 = arith.constant 0 : i32
    return %c0_i32, %c0_i32_0 : i32, i32
  }
  func.func @transform_3(%arg0: i32) -> (i32, i32) {
    %c0_i32 = arith.constant 0 : i32
    %c0_i32_0 = arith.constant 0 : i32
    return %arg0, %c0_i32 : i32, i32
  }
}

</mosaic_0001>

<llo_original>
// kernel: tpu_custom_call.1
$region0: #{tpu_custom_call.1}
  #allocation0 [shape = 'u32[]', space=smem, size = 0x4, offset = 0x4, fixed_abs, tag = 'smem constant byte address 0x4 - core index']
  #allocation1 [shape = 'u32[144,128]{1,0:T(1,128)}', space=vmem, size = 0x12000, scoped, tag = 'internal scratch']
  %s0 = inlined_call_operand.hbm [shape: f32[16,128], index: 0, kind: input, shape index: {}]
  %s1 = inlined_call_operand.vmem [shape: f32[1,128], index: 1, kind: input, shape index: {}]
  %s2 = inlined_call_operand.hbm [shape: f32[128,384], index: 2, kind: input, shape index: {}]
  %s3 = inlined_call_operand.hbm [shape: f32[16,384], index: 3, kind: output, shape index: {}]
  %s4 = sld [smem:[#allocation0]]
  $region30: #{tpu_custom_call.1} parent=0
    _
  %s6 = ssub.s32 1, %s4
  %s7 = scalar_select 0, %s6, %s4
  $region1: #{tpu_custom_call.1} parent=0
    #allocation2 [shape = 'u8[8192]{0}', space=vmem, size = 0x2000, scoped, tag = 'input window, operand 0, single buffered']
    #allocation3 [shape = 's32[1]{0}', space=sflag, size = 0x4, scoped, tag = 'scoped memory for tpu_custom_call.1']
    #allocation4 [shape = 's32[1]{0}', space=sflag, size = 0x4, scoped, tag = 'scoped memory for tpu_custom_call.1']
    #allocation5 [shape = 'u8[196608]{0}', space=vmem, size = 0x30000, scoped, tag = 'input window, operand 2, single buffered']
    #allocation6 [shape = 's32[1]{0}', space=sflag, size = 0x4, scoped, tag = 'scoped memory for tpu_custom_call.1']
    #allocation7 [shape = 'u8[24576]{0}', space=vmem, size = 0x6000, scoped, tag = 'output window, operand 0, single buffered']
    %8 = vsyncpa [#allocation3], 0
    %9 = vsyncpa [#allocation6], 0
    %10 = vsyncpa [#allocation4], 0
    // Predicated region
    $region2: #{tpu_custom_call.1} parent=1 // pred_check
      _
    $region3: #{tpu_custom_call.1} parent=1 // pred_check_branch
      %12 = sbr.rel (0) target = $region5
    $region4: #{tpu_custom_call.1} parent=1 // pred_region
      %s14 = ssub.s32 256, 256
      %15 = vsyncadd [#allocation3], %s14
      %s16 = sshll.u32 [#allocation2], 4
      %s17 = int_to_ptr.vmem [resolvable:$true] %s16
      %22 = dma.hbm_to_vmem [thread:$0]  %s0, 256, %s17, [#allocation3], 128, 128, 8
    $region5: #{tpu_custom_call.1} parent=1 // pred_fallthru
      _
    // Predicated region
    $region6: #{tpu_custom_call.1} parent=1 // pred_check
      _
    $region7: #{tpu_custom_call.1} parent=1 // pred_check_branch
      %24 = sbr.rel (0) target = $region9
    $region8: #{tpu_custom_call.1} parent=1 // pred_region
      _
    $region9: #{tpu_custom_call.1} parent=1 // pred_fallthru
      _
    // Predicated region
    $region10: #{tpu_custom_call.1} parent=1 // pred_check
      _
    $region11: #{tpu_custom_call.1} parent=1 // pred_check_branch
      %26 = sbr.rel (0) target = $region13
    $region12: #{tpu_custom_call.1} parent=1 // pred_region
      %s28 = ssub.s32 6144, 6144
      %29 = vsyncadd [#allocation6], %s28
      %s30 = sshll.u32 [#allocation5], 4
      %s31 = int_to_ptr.vmem [resolvable:$true] %s30
      %36 = dma.hbm_to_vmem [thread:$0]  %s2, 6144, %s31, [#allocation6], 384, 384, 24
    $region13: #{tpu_custom_call.1} parent=1 // pred_fallthru
      _
    // Predicated region
    $region14: #{tpu_custom_call.1} parent=1 // pred_check
      _
    $region15: #{tpu_custom_call.1} parent=1 // pred_check_branch
      %38 = sbr.rel (0) target = $region17
    $region16: #{tpu_custom_call.1} parent=1 // pred_region
      %39 = dma.done [#allocation3], 256
    $region17: #{tpu_custom_call.1} parent=1 // pred_fallthru
      _
    // Predicated region
    $region18: #{tpu_custom_call.1} parent=1 // pred_check
      _
    $region19: #{tpu_custom_call.1} parent=1 // pred_check_branch
      %41 = sbr.rel (0) target = $region21
    $region20: #{tpu_custom_call.1} parent=1 // pred_region
      %42 = dma.done [#allocation6], 6144
    $region21: #{tpu_custom_call.1} parent=1 // pred_fallthru
      _
    %v43 = vld [vmem:[#allocation2] sm:$0xff]
    %v44 = vld [vmem:[#allocation2 + $0x8] sm:$0xff]
    %v45 = vmul.f32 %v43, %v43
    %v46 = vmul.f32 %v44, %v44
    %47 = vadd.xlane.f32.xlu0 %v45
    %v48 = vpop.xlane.xlu0 %47
    %49 = vadd.xlane.f32.xlu0 %v46
    %v50 = vpop.xlane.xlu0 %49
    %v51 = vrcp.pop 128.0
    %v52 = vmul.f32 %v48, %v51
    %v53 = vmul.f32 %v50, %v51
    %v54 = vadd.f32 %v52, 1e-05
    %v55 = vadd.f32 %v53, 1e-05
    %v56 = vrsqrt.pop %v54
    %v57 = vrsqrt.pop %v55
    %v58 = vmul.f32 %v43, %v56
    %v59 = vmul.f32 %v44, %v57
    %v60 = vld [vmem:[%s1] sm:$0x1]
    %v62 = vlaneseq
    %v63 = vshrl.u32 %v62, 7
    %v64 = vsub.s32 0, %v63
    %v65 = vrot.slane %v60, %v64
    %v67 = vmul.f32 %v58, %v65
    %v68 = vmul.f32 %v59, %v65
    %v69 = vld [vmem:[#allocation5] sm:$0xff]
    %v70 = vld [vmem:[#allocation5 + $0x8] sm:$0xff]
    %v71 = vld [vmem:[#allocation5 + $0x10] sm:$0xff]
    %v72 = vld [vmem:[#allocation5 + $0x18] sm:$0xff]
    %v73 = vld [vmem:[#allocation5 + $0x20] sm:$0xff]
    %v74 = vld [vmem:[#allocation5 + $0x28] sm:$0xff]
    %v75 = vld [vmem:[#allocation5 + $0x30] sm:$0xff]
    %v76 = vld [vmem:[#allocation5 + $0x38] sm:$0xff]
    %v77 = vld [vmem:[#allocation5 + $0x40] sm:$0xff]
    %v78 = vld [vmem:[#allocation5 + $0x48] sm:$0xff]
    %v79 = vld [vmem:[#allocation5 + $0x50] sm:$0xff]
    %v80 = vld [vmem:[#allocation5 + $0x58] sm:$0xff]
    %v81 = vld [vmem:[#allocation5 + $0x60] sm:$0xff]
    %v82 = vld [vmem:[#allocation5 + $0x68] sm:$0xff]
    %v83 = vld [vmem:[#allocation5 + $0x70] sm:$0xff]
    %v84 = vld [vmem:[#allocation5 + $0x78] sm:$0xff]
    %v85 = vld [vmem:[#allocation5 + $0x80] sm:$0xff]
    %v86 = vld [vmem:[#allocation5 + $0x88] sm:$0xff]
    %v87 = vld [vmem:[#allocation5 + $0x90] sm:$0xff]
    %v88 = vld [vmem:[#allocation5 + $0x98] sm:$0xff]
    %v89 = vld [vmem:[#allocation5 + $0xa0] sm:$0xff]
    %v90 = vld [vmem:[#allocation5 + $0xa8] sm:$0xff]
    %v91 = vld [vmem:[#allocation5 + $0xb0] sm:$0xff]
    %v92 = vld [vmem:[#allocation5 + $0xb8] sm:$0xff]
    %v93 = vld [vmem:[#allocation5 + $0xc0] sm:$0xff]
    %v94 = vld [vmem:[#allocation5 + $0xc8] sm:$0xff]
    %v95 = vld [vmem:[#allocation5 + $0xd0] sm:$0xff]
    %v96 = vld [vmem:[#allocation5 + $0xd8] sm:$0xff]
    %v97 = vld [vmem:[#allocation5 + $0xe0] sm:$0xff]
    %v98 = vld [vmem:[#allocation5 + $0xe8] sm:$0xff]
    %v99 = vld [vmem:[#allocation5 + $0xf0] sm:$0xff]
    %v100 = vld [vmem:[#allocation5 + $0xf8] sm:$0xff]
    %v101 = vld [vmem:[#allocation5 + $0x100] sm:$0xff]
    %v102 = vld [vmem:[#allocation5 + $0x108] sm:$0xff]
    %v103 = vld [vmem:[#allocation5 + $0x110] sm:$0xff]
    %v104 = vld [vmem:[#allocation5 + $0x118] sm:$0xff]
    %v105 = vld [vmem:[#allocation5 + $0x120] sm:$0xff]
    %v106 = vld [vmem:[#allocation5 + $0x128] sm:$0xff]
    %v107 = vld [vmem:[#allocation5 + $0x130] sm:$0xff]
    %v108 = vld [vmem:[#allocation5 + $0x138] sm:$0xff]
    %v109 = vld [vmem:[#allocation5 + $0x140] sm:$0xff]
    %v110 = vld [vmem:[#allocation5 + $0x148] sm:$0xff]
    %v111 = vld [vmem:[#allocation5 + $0x150] sm:$0xff]
    %v112 = vld [vmem:[#allocation5 + $0x158] sm:$0xff]
    %v113 = vld [vmem:[#allocation5 + $0x160] sm:$0xff]
    %v114 = vld [vmem:[#allocation5 + $0x168] sm:$0xff]
    %v115 = vld [vmem:[#allocation5 + $0x170] sm:$0xff]
    %v116 = vld [vmem:[#allocation5 + $0x178] sm:$0xff]
    %117 = vmatprep.subr.mxu0 %v115
    %118 = vmatpush1.msra.mxu0 %v114
    %119 = vmatprep.subr.mxu0 %v112
    %120 = vmatpush1.msra.mxu0 %v111
    %121 = vmatprep.subr.mxu0 %v109
    %122 = vmatpush1.msra.mxu0 %v108
    %123 = vmatprep.subr.mxu0 %v106
    %124 = vmatpush1.msra.mxu0 %v105
    %125 = vmatprep.subr.mxu0 %v103
    %126 = vmatpush1.msra.mxu0 %v102
    %127 = vmatprep.subr.mxu0 %v100
    %128 = vmatpush1.msra.mxu0 %v99
    %129 = vmatprep.subr.mxu0 %v97
    %130 = vmatpush1.msra.mxu0 %v96
    %131 = vmatprep.subr.mxu0 %v94
    %132 = vmatpush1.msra.mxu0 %v93
    %133 = vmatprep.subr.mxu0 %v91
    %134 = vmatpush1.msra.mxu0 %v90
    %135 = vmatprep.subr.mxu0 %v88
    %136 = vmatpush1.msra.mxu0 %v87
    %137 = vmatprep.subr.mxu0 %v85
    %138 = vmatpush1.msra.mxu0 %v84
    %139 = vmatprep.subr.mxu0 %v82
    %140 = vmatpush1.msra.mxu0 %v81
    %141 = vmatprep.subr.mxu0 %v79
    %142 = vmatpush1.msra.mxu0 %v78
    %143 = vmatprep.subr.mxu0 %v76
    %144 = vmatpush1.msra.mxu0 %v75
    %145 = vmatprep.subr.mxu0 %v73
    %146 = vmatpush1.msra.mxu0 %v72
    %147 = vmatprep.subr.mxu0 %v70
    %148 = vmatpush1.msra.mxu0 %v69
    %149 = vmatprep.subr.mxu0 0.0
    %150 = vmatpush2.msra.mxu0 0.0
    %151 = vmatprep.subr.mxu0 0.0
    %152 = vmatpush2.msra.mxu0 0.0
    %153 = vmatprep.subr.mxu0 0.0
    %154 = vmatpush2.msra.mxu0 0.0
    %155 = vmatprep.subr.mxu0 0.0
    %156 = vmatpush2.msra.mxu0 0.0
    %157 = vmatprep.subr.mxu0 0.0
    %158 = vmatpush2.msra.mxu0 0.0
    %159 = vmatprep.subr.mxu0 0.0
    %160 = vmatpush2.msra.mxu0 0.0
    %161 = vmatprep.subr.mxu0 0.0
    %162 = vmatpush2.msra.mxu0 0.0
    %163 = vmatprep.subr.mxu0 0.0
    %164 = vmatpush2.msra.mxu0 0.0
    %165 = vmatprep.subr.mxu0 0.0
    %166 = vmatpush2.msra.mxu0 0.0
    %167 = vmatprep.subr.mxu0 0.0
    %168 = vmatpush2.msra.mxu0 0.0
    %169 = vmatprep.subr.mxu0 0.0
    %170 = vmatpush2.msra.mxu0 0.0
    %171 = vmatprep.subr.mxu0 0.0
    %172 = vmatpush2.msra.mxu0 0.0
    %173 = vmatprep.subr.mxu0 0.0
    %174 = vmatpush2.msra.mxu0 0.0
    %175 = vmatprep.subr.mxu0 0.0
    %176 = vmatpush2.msra.mxu0 0.0
    %177 = vmatprep.subr.mxu0 0.0
    %178 = vmatpush2.msra.mxu0 0.0
    %179 = vmatprep.subr.mxu0 0.0
    %180 = vmatpush2.msra.mxu0 0.0
    %181 = vmatprep.mubr.f32.mxu0 0.0
    %182 = vmatmul.mubr.f32.gmra.mxu0 %v67
    %v183 = vpop.f32.mrf.mxu0
    %v184 = vadd.f32 0.0, %v183
    %v185 = vpop.f32.mrf.mxu0
    %v186 = vadd.f32 0.0, %v185
    %187 = vmatprep.mubr.f32.mxu0 0.0
    %188 = vmatmul.mubr.f32.gmra.mxu0 %v68
    %v189 = vpop.f32.mrf.mxu0
    %v190 = vadd.f32 0.0, %v189
    %v191 = vpop.f32.mrf.mxu0
    %v192 = vadd.f32 0.0, %v191
    %193 = vdwg.mxu0
    %194 = vmatprep.subr.mxu0 0.0
    %195 = vmatpush1.msra.mxu0 %v116
    %196 = vmatprep.subr.mxu0 0.0
    %197 = vmatpush1.msra.mxu0 %v113
    %198 = vmatprep.subr.mxu0 0.0
    %199 = vmatpush1.msra.mxu0 %v110
    %200 = vmatprep.subr.mxu0 0.0
    %201 = vmatpush1.msra.mxu0 %v107
    %202 = vmatprep.subr.mxu0 0.0
    %203 = vmatpush1.msra.mxu0 %v104
    %204 = vmatprep.subr.mxu0 0.0
    %205 = vmatpush1.msra.mxu0 %v101
    %206 = vmatprep.subr.mxu0 0.0
    %207 = vmatpush1.msra.mxu0 %v98
    %208 = vmatprep.subr.mxu0 0.0
    %209 = vmatpush1.msra.mxu0 %v95
    %210 = vmatprep.subr.mxu0 0.0
    %211 = vmatpush1.msra.mxu0 %v92
    %212 = vmatprep.subr.mxu0 0.0
    %213 = vmatpush1.msra.mxu0 %v89
    %214 = vmatprep.subr.mxu0 0.0
    %215 = vmatpush1.msra.mxu0 %v86
    %216 = vmatprep.subr.mxu0 0.0
    %217 = vmatpush1.msra.mxu0 %v83
    %218 = vmatprep.subr.mxu0 0.0
    %219 = vmatpush1.msra.mxu0 %v80
    %220 = vmatprep.subr.mxu0 0.0
    %221 = vmatpush1.msra.mxu0 %v77
    %222 = vmatprep.subr.mxu0 0.0
    %223 = vmatpush1.msra.mxu0 %v74
    %224 = vmatprep.subr.mxu0 0.0
    %225 = vmatpush1.msra.mxu0 %v71
    %226 = vmatprep.subr.mxu0 0.0
    %227 = vmatpush2.msra.mxu0 0.0
    %228 = vmatprep.subr.mxu0 0.0
    %229 = vmatpush2.msra.mxu0 0.0
    %230 = vmatprep.subr.mxu0 0.0
    %231 = vmatpush2.msra.mxu0 0.0
    %232 = vmatprep.subr.mxu0 0.0
    %233 = vmatpush2.msra.mxu0 0.0
    %234 = vmatprep.subr.mxu0 0.0
    %235 = vmatpush2.msra.mxu0 0.0
    %236 = vmatprep.subr.mxu0 0.0
    %237 = vmatpush2.msra.mxu0 0.0
    %238 = vmatprep.subr.mxu0 0.0
    %239 = vmatpush2.msra.mxu0 0.0
    %240 = vmatprep.subr.mxu0 0.0
    %241 = vmatpush2.msra.mxu0 0.0
    %242 = vmatprep.subr.mxu0 0.0
    %243 = vmatpush2.msra.mxu0 0.0
    %244 = vmatprep.subr.mxu0 0.0
    %245 = vmatpush2.msra.mxu0 0.0
    %246 = vmatprep.subr.mxu0 0.0
    %247 = vmatpush2.msra.mxu0 0.0
    %248 = vmatprep.subr.mxu0 0.0
    %249 = vmatpush2.msra.mxu0 0.0
    %250 = vmatprep.subr.mxu0 0.0
    %251 = vmatpush2.msra.mxu0 0.0
    %252 = vmatprep.subr.mxu0 0.0
    %253 = vmatpush2.msra.mxu0 0.0
    %254 = vmatprep.subr.mxu0 0.0
    %255 = vmatpush2.msra.mxu0 0.0
    %256 = vmatprep.subr.mxu0 0.0
    %257 = vmatpush2.msra.mxu0 0.0
    %258 = vmatprep.mubr.f32.mxu0 0.0
    %259 = vmatmul.mubr.f32.gmra.mxu0 %v67
    %v260 = vpop.f32.mrf.mxu0
    %v261 = vadd.f32 0.0, %v260
    %v262 = vpop.f32.mrf.mxu0
    %263 = vmatprep.mubr.f32.mxu0 0.0
    %264 = vmatmul.mubr.f32.gmra.mxu0 %v68
    %v265 = vpop.f32.mrf.mxu0
    %v266 = vadd.f32 0.0, %v265
    %v267 = vpop.f32.mrf.mxu0
    %268 = vdwg.mxu0
    %269 = vst [vmem:[#allocation7] sm:$0xff] %v184
    %270 = vst [vmem:[#allocation7 + $0x8] sm:$0xff] %v186
    %271 = vst [vmem:[#allocation7 + $0x10] sm:$0xff] %v261
    %272 = vst [vmem:[#allocation7 + $0x18] sm:$0xff] %v190
    %273 = vst [vmem:[#allocation7 + $0x20] sm:$0xff] %v192
    %274 = vst [vmem:[#allocation7 + $0x28] sm:$0xff] %v266
    // Predicated region
    $region22: #{tpu_custom_call.1} parent=1 // pred_check
      _
    $region23: #{tpu_custom_call.1} parent=1 // pred_check_branch
      %276 = sbr.rel (0) target = $region25
    $region24: #{tpu_custom_call.1} parent=1 // pred_region
      %s278 = ssub.s32 768, 768
      %279 = vsyncadd [#allocation4], %s278
      %s280 = sshll.u32 [#allocation7], 4
      %s281 = int_to_ptr.vmem [resolvable:$true] %s280
      %286 = dma.vmem_to_hbm [thread:$0]  %s281, 768, %s3, [#allocation4], 384, 384, 24
    $region25: #{tpu_custom_call.1} parent=1 // pred_fallthru
      _
    // Predicated region
    $region26: #{tpu_custom_call.1} parent=1 // pred_check
      _
    $region27: #{tpu_custom_call.1} parent=1 // pred_check_branch
      %288 = sbr.rel (0) target = $region29
    $region28: #{tpu_custom_call.1} parent=1 // pred_region
      %289 = dma.done [#allocation4], 768
    $region29: #{tpu_custom_call.1} parent=1 // pred_fallthru
      _
    %290 = vsyncpa [#allocation3], 1
    %291 = vsyncpa [#allocation6], 1
    %292 = vsyncpa [#allocation4], 1

</llo_original>
